<compile_context>
chip_gen: v6e
topology: v6e:2x2x1
jax: 0.10.0
libtpu: 0.0.40
codegen_flags: <defaults>
</compile_context>

<pallas_src>
import jax
import jax.numpy as jnp
from jax.experimental import pallas as pl
from jax.experimental.pallas import tpu as pltpu


def _round_up(x, m):
    return ((x + m - 1) // m) * m


def _cbn_kernel(p_ref, w_ref, shift_ref, o_ref):
    # p_ref:     (TM, K)       bf16 im2col patches (rows of the output)
    # w_ref:     (K, CP)       bf16 conv weights with BN scale folded in
    # shift_ref: (1, CP)       f32 fused BN shift = beta - mean * scale
    # o_ref:     (TM, CP)      f32 output rows (lane-dense, CP % 128 == 0)
    acc = jnp.dot(p_ref[...], w_ref[...], preferred_element_type=jnp.float32)
    y = acc + shift_ref[...]                       # BN shift (scale already in w)
    y = y * jnp.clip(y + 3.0, 0.0, 6.0) * (1.0 / 6.0)   # HSwish, f32 (v5e-safe)
    o_ref[...] = y.astype(o_ref.dtype)


def cbn_forward(x_nchw, weight_oihw, gamma, beta, running_mean, running_var,
                *, stride=1, padding=0, eps=1e-5, row_tile=128):
    """Conv2d(groups=1, bias=False) + BatchNorm2d(eval) + HSwish."""
    N, Cin, H, W = x_nchw.shape
    Cout, Cin_w, KH, KW = weight_oihw.shape
    assert Cin_w == Cin  # TODO(synk): grouped convolution (groups != 1) not implemented

    Ho = (H + 2 * padding - KH) // stride + 1
    Wo = (W + 2 * padding - KW) // stride + 1
    K = KH * KW * Cin

    # ---- Fuse BN (inference) into the conv weights + a per-channel shift ----
    scale = gamma / jnp.sqrt(running_var + eps)
    shift = beta - running_mean * scale
    # OIHW -> HWIO, fold scale per output channel, flatten to (K, Cout).
    w_hwio = jnp.transpose(weight_oihw, (2, 3, 1, 0)).astype(jnp.float32)
    w_hwio = w_hwio * scale[None, None, None, :]
    w2d = w_hwio.reshape(K, Cout)

    # ---- im2col in the wrapper (pure layout work, fused by XLA) ----
    x = jnp.transpose(x_nchw, (0, 2, 3, 1)).astype(jnp.float32)   # NCHW -> NHWC
    xp = jnp.pad(x, ((0, 0), (padding, padding), (padding, padding), (0, 0)))
    pieces = []
    for kh in range(KH):
        for kw in range(KW):
            pieces.append(
                xp[:, kh:kh + (Ho - 1) * stride + 1:stride,
                      kw:kw + (Wo - 1) * stride + 1:stride, :])
    patches = jnp.concatenate(pieces, axis=-1)        # (N, Ho, Wo, K), (kh,kw,cin) order
    M = N * Ho * Wo
    patches = patches.reshape(M, K)

    # ---- Pad to lane/sublane-dense tiles ----
    CP = _round_up(Cout, 128)                  # lane-dense output channels
    TM = min(row_tile, _round_up(M, 8))        # rows per grid step
    MP = _round_up(M, TM)

    patches_p = jnp.pad(patches, ((0, MP - M), (0, 0))).astype(jnp.bfloat16)
    w2d_p = jnp.pad(w2d, ((0, 0), (0, CP - Cout))).astype(jnp.bfloat16)
    shift_p = jnp.pad(shift.astype(jnp.float32), (0, CP - Cout)).reshape(1, CP)

    grid = (MP // TM,)
    out2d = pl.pallas_call(
        _cbn_kernel,
        out_shape=jax.ShapeDtypeStruct((MP, CP), jnp.float32),
        grid_spec=pl.GridSpec(
            grid=grid,
            in_specs=[
                pl.BlockSpec((TM, K), lambda i: (i, 0)),   # row tile of patches
                pl.BlockSpec((K, CP), lambda i: (0, 0)),   # weights (resident)
                pl.BlockSpec((1, CP), lambda i: (0, 0)),   # shift (resident)
            ],
            out_specs=pl.BlockSpec((TM, CP), lambda i: (i, 0)),
        ),
        compiler_params=pltpu.CompilerParams(
            dimension_semantics=("parallel",)),
    )(patches_p, w2d_p, shift_p)

    # Strip padding, restore NHWC then NCHW (PyTorch convention).
    out = out2d[:M, :Cout].reshape(N, Ho, Wo, Cout)
    return jnp.transpose(out, (0, 3, 1, 2)).astype(x_nchw.dtype)


def _reference(x_nchw, weight_oihw, gamma, beta, rm, rv, *, stride=1,
               padding=0, eps=1e-5, emulate_bf16=False):
    scale = gamma / jnp.sqrt(rv + eps)
    shift = beta - rm * scale
    w = weight_oihw.astype(jnp.float32) * scale[:, None, None, None]
    x = x_nchw.astype(jnp.float32)
    if emulate_bf16:
        x = x.astype(jnp.bfloat16).astype(jnp.float32)
        w = w.astype(jnp.bfloat16).astype(jnp.float32)
    y = jax.lax.conv_general_dilated(
        x, w, window_strides=(stride, stride),
        padding=[(padding, padding), (padding, padding)],
        dimension_numbers=('NCHW', 'OIHW', 'NCHW'))
    y = y + shift[None, :, None, None]
    return y * jnp.clip(y + 3.0, 0.0, 6.0) / 6.0


if __name__ == "__main__":
    # Module defaults: out_channels=24, kernel=3, stride=1, padding=0,
    # groups=1, bias=False; in_channels=4, small spatial dims.
    N, Cin, H, W = 2, 4, 16, 16
    Cout, KH, KW = 24, 3, 3
    stride, padding = 1, 0

    key = jax.random.PRNGKey(0)
    kx, kw = jax.random.split(key)
    x = jax.random.normal(kx, (N, Cin, H, W), dtype=jnp.float32)
    weight = (jax.random.normal(kw, (Cout, Cin, KH, KW), dtype=jnp.float32)
              * 0.1)

    # Deterministic, non-trivial BatchNorm parameters / running stats.
    gamma = 1.0 + 0.05 * jnp.arange(Cout, dtype=jnp.float32)
    beta = 0.01 * jnp.arange(Cout, dtype=jnp.float32)
    running_mean = 0.02 * jnp.arange(Cout, dtype=jnp.float32)
    running_var = 1.0 + 0.03 * jnp.arange(Cout, dtype=jnp.float32)

    out = cbn_forward(x, weight, gamma, beta, running_mean, running_var,
                      stride=stride, padding=padding)
    out = jax.block_until_ready(out)

    Ho = (H + 2 * padding - KH) // stride + 1
    Wo = (W + 2 * padding - KW) // stride + 1
    assert out.shape == (N, Cout, Ho, Wo), out.shape

    # Exact check against a reference with matching bf16 operand rounding.
    ref_bf16 = _reference(x, weight, gamma, beta, running_mean, running_var,
                          stride=stride, padding=padding, emulate_bf16=True)
    err = float(jnp.max(jnp.abs(out - ref_bf16)))
    assert jnp.allclose(out, ref_bf16, rtol=2e-3, atol=2e-3), err

    # Sanity check against the full-f32 PyTorch-equivalent reference
    # (looser tolerance accounts for bf16 matmul operands).
    ref_f32 = _reference(x, weight, gamma, beta, running_mean, running_var,
                         stride=stride, padding=padding, emulate_bf16=False)
    err32 = float(jnp.max(jnp.abs(out - ref_f32)))
    assert jnp.allclose(out, ref_f32, rtol=5e-2, atol=5e-2), err32

    print("KERNEL_OK")
</pallas_src>

<mosaic_0001>
module attributes {stable_mosaic.version = 11 : i64} {
  func.func @_cbn_kernel(%arg0: i32, %arg1: memref<128x36xbf16, #tpu.memory_space<vmem>>, %arg2: memref<36x128xbf16, #tpu.memory_space<vmem>>, %arg3: memref<1x128xf32, #tpu.memory_space<vmem>>, %arg4: memref<128x128xf32, #tpu.memory_space<vmem>>) attributes {dimension_semantics = [#tpu.dimension_semantics<parallel>], iteration_bounds = array<i64: 4>, scalar_prefetch = 0 : i64, scratch_operands = 0 : i64, tpu.core_type = #tpu.core_type<tc>, window_params = [{transform_indices = @transform_0, window_bounds = array<i64: 128, 36>}, {pipeline_mode = #tpu.pipeline_mode<synchronous>, transform_indices = @transform_1, window_bounds = array<i64: 36, 128>}, {pipeline_mode = #tpu.pipeline_mode<synchronous>, transform_indices = @transform_2, window_bounds = array<i64: 1, 128>}, {transform_indices = @transform_3, window_bounds = array<i64: 128, 128>}]} {
    %c0 = arith.constant 0 : index
    %c0_0 = arith.constant 0 : index
    %0 = vector.load %arg1[%c0, %c0_0] : memref<128x36xbf16, #tpu.memory_space<vmem>>, vector<128x36xbf16>
    %c0_1 = arith.constant 0 : index
    %c0_2 = arith.constant 0 : index
    %1 = vector.load %arg2[%c0_1, %c0_2] : memref<36x128xbf16, #tpu.memory_space<vmem>>, vector<36x128xbf16>
    %cst = arith.constant dense<0.000000e+00> : vector<128x128xf32>
    %2 = tpu.matmul %0, %1, %cst {dimension_numbers = #tpu.dot_dimension_numbers<[1], [0], [0], [1], [0, 0, 1, 1], [], []>} : vector<128x36xbf16>, vector<36x128xbf16>, vector<128x128xf32> -> vector<128x128xf32>
    %c0_3 = arith.constant 0 : index
    %c0_4 = arith.constant 0 : index
    %3 = vector.load %arg3[%c0_3, %c0_4] : memref<1x128xf32, #tpu.memory_space<vmem>>, vector<1x128xf32>
    %4 = vector.broadcast %3 : vector<1x128xf32> to vector<128x128xf32>
    %5 = arith.addf %2, %4 : vector<128x128xf32>
    %cst_5 = arith.constant 3.000000e+00 : f32
    %6 = vector.broadcast %cst_5 : f32 to vector<128x128xf32>
    %7 = arith.addf %5, %6 : vector<128x128xf32>
    %cst_6 = arith.constant 0.000000e+00 : f32
    %cst_7 = arith.constant 6.000000e+00 : f32
    %8 = vector.broadcast %cst_6 : f32 to vector<128x128xf32>
    %9 = arith.maximumf %8, %7 : vector<128x128xf32>
    %10 = vector.broadcast %cst_7 : f32 to vector<128x128xf32>
    %11 = arith.minimumf %10, %9 : vector<128x128xf32>
    %12 = arith.mulf %5, %11 : vector<128x128xf32>
    %cst_8 = arith.constant 0.166666672 : f32
    %13 = vector.broadcast %cst_8 : f32 to vector<128x128xf32>
    %14 = arith.mulf %12, %13 : vector<128x128xf32>
    %c0_9 = arith.constant 0 : index
    %c0_10 = arith.constant 0 : index
    %15 = vector.load %arg4[%c0_9, %c0_10] : memref<128x128xf32, #tpu.memory_space<vmem>>, vector<128x128xf32>
    tpu.vector_store %arg4[%c0_9, %c0_10], %14 {strides = array<i32>} : memref<128x128xf32, #tpu.memory_space<vmem>>, vector<128x128xf32>,
    return
  }
  func.func @transform_0(%arg0: i32) -> (i32, i32) {
    %c0_i32 = arith.constant 0 : i32
    %c0_i32_0 = arith.constant 0 : i32
    return %arg0, %c0_i32 : i32, i32
  }
  func.func @transform_1(%arg0: i32) -> (i32, i32) {
    %c0_i32 = arith.constant 0 : i32
    %c0_i32_0 = arith.constant 0 : i32
    %c0_i32_1 = arith.constant 0 : i32
    return %c0_i32, %c0_i32_0 : i32, i32
  }
  func.func @transform_2(%arg0: i32) -> (i32, i32) {
    %c0_i32 = arith.constant 0 : i32
    %c0_i32_0 = arith.constant 0 : i32
    %c0_i32_1 = arith.constant 0 : i32
    return %c0_i32, %c0_i32_0 : i32, i32
  }
  func.func @transform_3(%arg0: i32) -> (i32, i32) {
    %c0_i32 = arith.constant 0 : i32
    %c0_i32_0 = arith.constant 0 : i32
    return %arg0, %c0_i32 : i32, i32
  }
}

</mosaic_0001>

<llo_original>
// kernel: tpu_custom_call.1
$region0: #{tpu_custom_call.1}
  #allocation0 [shape = 'u32[]', space=smem, size = 0x4, offset = 0x4, fixed_abs, tag = 'smem constant byte address 0x4 - core index']
  #allocation1 [shape = 'u32[144,128]{1,0:T(1,128)}', space=vmem, size = 0x12000, scoped, tag = 'internal scratch']
  %s0 = inlined_call_operand.vmem [shape: bf16[512,36], index: 0, kind: input, shape index: {}]
  %s1 = inlined_call_operand.vmem [shape: bf16[36,128], index: 1, kind: input, shape index: {}]
  %s2 = inlined_call_operand.vmem [shape: f32[1,128], index: 2, kind: input, shape index: {}]
  %s3 = inlined_call_operand.hbm [shape: f32[512,128], index: 3, kind: output, shape index: {}]
  %s4 = sld [smem:[#allocation0]]
  $region45: #{tpu_custom_call.1} parent=0
    _
  %s6 = ssub.s32 1, %s4
  %s7 = scalar_select 0, %s6, %s4
  $region1: #{tpu_custom_call.1} parent=0
    #allocation2 [shape = 'u8[131072]{0}', space=vmem, size = 0x20000, scoped, tag = 'output window, operand 0']
    #allocation3 [shape = 's32[2]{0}', space=sflag, size = 0x8, scoped, tag = 'scoped memory for tpu_custom_call.1']
    %8 = vsyncpa [#allocation3], 0
    %s9 = scalar_lea.sflag [#allocation3], 1
    %10 = vsyncpa %s9, 0
    loop: start=0, step=1, limit=6
    $region2: #{tpu_custom_call.1} parent=1 // loop_pre_header
      _
    $region3: #{tpu_custom_call.1} parent=1 // loop_header
      %s12 = sphi 0, %s16
      %p13 = scmp.ge.s32.totalorder %s12, 6
      %s22 = sphi 0, %s24
      %s25 = sphi 0, %s22
      %s26 = sphi 0, %s25
      %s42 = sphi 0, %s26
      %s46 = sphi 0, %s46
      %s48 = sphi 0, %s46
      %s49 = sphi 0, %s48
      %s63 = sphi 0, %s49
      %s67 = sphi 0, %s67
      %s69 = sphi 0, %s67
      %s70 = sphi 0, %s69
      %s84 = sphi 0, %s70
      %s90 = sphi 0, %s92
      %s93 = sphi 0, %s90
      %s94 = sphi 0, %s93
      %s110 = sphi 0, %s94
    $region4: #{tpu_custom_call.1} parent=1 // loop_header_branch
      %15 = sbr.rel (%p13) target = $region8
    $region5: #{tpu_custom_call.1} parent=1 // loop_body
      %s17 = ssub.s32 %s12, 1
      %s18 = ssub.s32 %s12, 2
      %s19 = sadd.s32 %s12, 1
      %s20 = ssub.s32 %s12, %s19
      %p21 = scmp.eq.s32.totalorder %s20, 0
      %s23 = sadd.s32 %s22, 1
      %s24 = scalar_select %p21, %s22, %s23
      %p27 = pneg %p21
      %p28 = scmp.eq.s32.totalorder %s12, 3
      %p29 = por %p27, %p28
      %p30 = scmp.ne.s32.totalorder %s22, %s25
      %p31 = scmp.eq.s32.totalorder %s12, 0
      %p32 = por %p30, %p31
      %p33 = scmp.ne.s32.totalorder %s22, %s25
      %p34 = scmp.eq.s32.totalorder %s17, 3
      %p35 = por %p33, %p34
      %p36 = scmp.ne.s32.totalorder %s25, %s26
      %p37 = scmp.eq.s32.totalorder %s17, 0
      %p38 = por %p36, %p37
      %p39 = scmp.ne.s32.totalorder %s25, %s26
      %p40 = scmp.eq.s32.totalorder %s18, 3
      %p41 = por %p39, %p40
      %p43 = scmp.ne.s32.totalorder %s26, %s42
      %p44 = scmp.eq.s32.totalorder %s18, 0
      %p45 = por %p43, %p44
      %s47 = sadd.s32 %s46, 1
      %p50 = scmp.eq.s32.totalorder %s12, 3
      %p51 = scmp.ne.s32.totalorder %s46, %s48
      %p52 = scmp.eq.s32.totalorder %s12, 0
      %p53 = por %p51, %p52
      %p54 = scmp.ne.s32.totalorder %s46, %s48
      %p55 = scmp.eq.s32.totalorder %s17, 3
      %p56 = por %p54, %p55
      %p57 = scmp.ne.s32.totalorder %s48, %s49
      %p58 = scmp.eq.s32.totalorder %s17, 0
      %p59 = por %p57, %p58
      %p60 = scmp.ne.s32.totalorder %s48, %s49
      %p61 = scmp.eq.s32.totalorder %s18, 3
      %p62 = por %p60, %p61
      %p64 = scmp.ne.s32.totalorder %s49, %s63
      %p65 = scmp.eq.s32.totalorder %s18, 0
      %p66 = por %p64, %p65
      %s68 = sadd.s32 %s67, 1
      %p71 = scmp.eq.s32.totalorder %s12, 3
      %p72 = scmp.ne.s32.totalorder %s67, %s69
      %p73 = scmp.eq.s32.totalorder %s12, 0
      %p74 = por %p72, %p73
      %p75 = scmp.ne.s32.totalorder %s67, %s69
      %p76 = scmp.eq.s32.totalorder %s17, 3
      %p77 = por %p75, %p76
      %p78 = scmp.ne.s32.totalorder %s69, %s70
      %p79 = scmp.eq.s32.totalorder %s17, 0
      %p80 = por %p78, %p79
      %p81 = scmp.ne.s32.totalorder %s69, %s70
      %p82 = scmp.eq.s32.totalorder %s18, 3
      %p83 = por %p81, %p82
      %p85 = scmp.ne.s32.totalorder %s70, %s84
      %p86 = scmp.eq.s32.totalorder %s18, 0
      %p87 = por %p85, %p86
      %s88 = ssub.s32 %s12, %s19
      %p89 = scmp.eq.s32.totalorder %s88, 0
      %s91 = sadd.s32 %s90, 1
      %s92 = scalar_select %p89, %s90, %s91
      %p95 = pneg %p89
      %p96 = scmp.eq.s32.totalorder %s12, 3
      %p97 = por %p95, %p96
      %p98 = scmp.ne.s32.totalorder %s90, %s93
      %p99 = scmp.eq.s32.totalorder %s12, 0
      %p100 = por %p98, %p99
      %p101 = scmp.ne.s32.totalorder %s90, %s93
      %p102 = scmp.eq.s32.totalorder %s17, 3
      %p103 = por %p101, %p102
      %p104 = scmp.ne.s32.totalorder %s93, %s94
      %p105 = scmp.eq.s32.totalorder %s17, 0
      %p106 = por %p104, %p105
      %p107 = scmp.ne.s32.totalorder %s93, %s94
      %p108 = scmp.eq.s32.totalorder %s18, 3
      %p109 = por %p107, %p108
      %p111 = scmp.ne.s32.totalorder %s94, %s110
      %p112 = scmp.eq.s32.totalorder %s18, 0
      %p113 = por %p111, %p112
      %p114 = scmp.le.s32.totalorder 1, %s12
      %p115 = scmp.lt.s32.totalorder %s12, 5
      %p116 = pnand %p114, %p115
      %p117 = pneg %p116
      // Predicated region
      $region9: #{tpu_custom_call.1} parent=5 // pred_check
        _
      $region10: #{tpu_custom_call.1} parent=5 // pred_check_branch
        %119 = sbr.rel (%p116) target = $region12
      $region11: #{tpu_custom_call.1} parent=5 // pred_region
        %s120 = ssub.s32 %s12, 1
        // Predicated region
        $region13: #{tpu_custom_call.1} parent=11 // pred_check
          %p121 = pneg %p59
        $region14: #{tpu_custom_call.1} parent=11 // pred_check_branch
          %123 = sbr.rel (%p121) target = $region16
        $region15: #{tpu_custom_call.1} parent=11 // pred_region
          _
        $region16: #{tpu_custom_call.1} parent=11 // pred_fallthru
          _
        // Predicated region
        $region17: #{tpu_custom_call.1} parent=11 // pred_check
          %p124 = pneg %p80
        $region18: #{tpu_custom_call.1} parent=11 // pred_check_branch
          %126 = sbr.rel (%p124) target = $region20
        $region19: #{tpu_custom_call.1} parent=11 // pred_region
          _
        $region20: #{tpu_custom_call.1} parent=11 // pred_fallthru
          _
      $region12: #{tpu_custom_call.1} parent=5 // pred_fallthru
        _
      %p127 = scmp.lt.s32.totalorder %s12, 4
      // Predicated region
      $region21: #{tpu_custom_call.1} parent=5 // pred_check
        %p128 = pneg %p127
      $region22: #{tpu_custom_call.1} parent=5 // pred_check_branch
        %130 = sbr.rel (%p128) target = $region24
      $region23: #{tpu_custom_call.1} parent=5 // pred_region
        // Predicated region
        $region25: #{tpu_custom_call.1} parent=23 // pred_check
          %p131 = pneg %p32
        $region26: #{tpu_custom_call.1} parent=23 // pred_check_branch
          %133 = sbr.rel (%p131) target = $region28
        $region27: #{tpu_custom_call.1} parent=23 // pred_region
          %s134 = smul.u32 16, %s12
          %p135 = scmp.lt.s32.totalorder %s134, 63
          %s136 = scalar_select %p135, %s134, 63
          %s137 = smul.addr %s136, 4
          %s138 = scalar_lea.vmem %s0, %s137
          %s139 = smul.u32 16, %s12
        $region28: #{tpu_custom_call.1} parent=23 // pred_fallthru
          _
      $region24: #{tpu_custom_call.1} parent=5 // pred_fallthru
        _
      %p140 = scmp.le.s32.totalorder 1, %s12
      %p141 = scmp.lt.s32.totalorder %s12, 5
      %p142 = pnand %p140, %p141
      %p143 = pneg %p142
      // Predicated region
      $region29: #{tpu_custom_call.1} parent=5 // pred_check
        _
      $region30: #{tpu_custom_call.1} parent=5 // pred_check_branch
        %145 = sbr.rel (%p142) target = $region32
      $region31: #{tpu_custom_call.1} parent=5 // pred_region
        %s146 = ssub.s32 %s12, 1
        %s147 = smul.u32 16, %s17
        %p148 = scmp.lt.s32.totalorder %s147, 63
        %s149 = scalar_select %p148, %s147, 63
        %s150 = smul.addr %s149, 4
        %s151 = scalar_lea.vmem %s0, %s150
        %p152 = pneg %p38
        %p153 = pneg %p35
        %p154 = pneg %p59
        %p155 = pneg %p56
        %p156 = pneg %p80
        %p157 = pneg %p77
        %p158 = pneg %p106
        %p159 = pneg %p103
        %s160 = sand.u32 %s93, 1
        %s161 = scalar_lea.sflag [#allocation3], %s160
        %s162 = sand.u32 %s93, 1
        %s163 = smul.addr %s162, 128
        %s164 = scalar_lea.vmem [#allocation2], %s163
        %s165 = smul.u32 16, %s17
        %p166 = scmp.lt.s32.totalorder %s165, 63
        %s167 = scalar_select %p166, %s165, 63
        %s168 = smul.addr %s167, 4
        %s169 = scalar_lea.vmem %s0, %s168
        %s170 = smul.u32 16, %s17
        %s171 = smul.u32 16, %s17
        %v173 = vld [vmem:[%s169] sm:$0xf]
        %v174 = vld [vmem:[%s169 + $0x4] sm:$0xf]
        %v175 = vld [vmem:[%s169 + $0x8] sm:$0xf]
        %v176 = vld [vmem:[%s169 + $0xc] sm:$0xf]
        %v177 = vld [vmem:[%s169 + $0x10] sm:$0xf]
        %v178 = vld [vmem:[%s169 + $0x14] sm:$0xf]
        %v179 = vld [vmem:[%s169 + $0x18] sm:$0xf]
        %v180 = vld [vmem:[%s169 + $0x1c] sm:$0xf]
        %v181 = vld [vmem:[%s169 + $0x20] sm:$0xf]
        %v182 = vld [vmem:[%s169 + $0x24] sm:$0xf]
        %v183 = vld [vmem:[%s169 + $0x28] sm:$0xf]
        %v184 = vld [vmem:[%s169 + $0x2c] sm:$0xf]
        %v185 = vld [vmem:[%s169 + $0x30] sm:$0xf]
        %v186 = vld [vmem:[%s169 + $0x34] sm:$0xf]
        %v187 = vld [vmem:[%s169 + $0x38] sm:$0xf]
        %v188 = vld [vmem:[%s169 + $0x3c] sm:$0xf]
        %v189 = vld [vmem:[%s1] sm:$0xf]
        %v190 = vld [vmem:[%s1 + $0x4] sm:$0xf]
        %v191 = vld [vmem:[%s1 + $0x8] sm:$0xf]
        %v192 = vld [vmem:[%s1 + $0xc] sm:$0xf]
        %v193 = vld [vmem:[%s1 + $0x10] sm:$0x3]
        %v194 = vld [vmem:[%s2] sm:$0x1]
        %v196 = vlaneseq
        %v197 = vshrl.u32 %v196, 7
        %v198 = vsub.s32 0, %v197
        %v199 = vrot.slane %v194, %v198
        %v217 = vunpack.c.l.b16 %v173
        %v218 = vunpack.c.l.b16 %v174
        %v219 = vunpack.c.l.b16 %v175
        %v220 = vunpack.c.l.b16 %v176
        %v221 = vunpack.c.l.b16 %v177
        %v222 = vunpack.c.l.b16 %v178
        %v223 = vunpack.c.l.b16 %v179
        %v224 = vunpack.c.l.b16 %v180
        %v225 = vunpack.c.l.b16 %v181
        %v226 = vunpack.c.l.b16 %v182
        %v227 = vunpack.c.l.b16 %v183
        %v228 = vunpack.c.l.b16 %v184
        %v229 = vunpack.c.l.b16 %v185
        %v230 = vunpack.c.l.b16 %v186
        %v231 = vunpack.c.l.b16 %v187
        %v232 = vunpack.c.l.b16 %v188
        %v233 = vpack.c.b16 %v218, %v217
        %v234 = vpack.c.b16 %v220, %v219
        %v235 = vpack.c.b16 %v222, %v221
        %v236 = vpack.c.b16 %v224, %v223
        %v237 = vpack.c.b16 %v226, %v225
        %v238 = vpack.c.b16 %v228, %v227
        %v239 = vpack.c.b16 %v230, %v229
        %v240 = vpack.c.b16 %v232, %v231
        %v246 = vunpack.c.l.b16 %v189
        %v247 = vunpack.c.l.b16 %v190
        %v248 = vunpack.c.l.b16 %v191
        %v249 = vunpack.c.l.b16 %v192
        %v250 = vunpack.c.l.b16 %v193
        %v251 = vpack.c.b16 %v247, %v246
        %v252 = vpack.c.b16 %v249, %v248
        %v253 = vpack.c.b16 %v250, %v250
        %vm256 = vcmask 293888
        %v258 = vsel %vm256, %v233, 0
        %v261 = vsel %vm256, %v234, 0
        %v264 = vsel %vm256, %v235, 0
        %v267 = vsel %vm256, %v236, 0
        %v270 = vsel %vm256, %v237, 0
        %v273 = vsel %vm256, %v238, 0
        %v276 = vsel %vm256, %v239, 0
        %v279 = vsel %vm256, %v240, 0
        %vm281 = vcmask 1041408
        %v283 = vsel %vm281, %v253, 0
        %285 = vmatprep.subr.bf16.mxu0 0
        %286 = vmatpush1.bf16.msra.mxu0 0
        %287 = vmatprep.subr.bf16.mxu0 0
        %288 = vmatpush1.bf16.msra.mxu0 0
        %289 = vmatprep.subr.bf16.mxu0 0
        %290 = vmatpush1.bf16.msra.mxu0 0
        %291 = vmatprep.subr.bf16.mxu0 0
        %292 = vmatpush1.bf16.msra.mxu0 0
        %293 = vmatprep.subr.bf16.mxu0 0
        %294 = vmatpush1.bf16.msra.mxu0 0
        %295 = vmatprep.subr.bf16.mxu0 0
        %296 = vmatpush1.bf16.msra.mxu0 %v283
        %297 = vmatprep.subr.bf16.mxu0 0
        %298 = vmatpush1.bf16.msra.mxu0 %v252
        %299 = vmatprep.subr.bf16.mxu0 0
        %300 = vmatpush1.bf16.msra.mxu0 %v251
        %301 = vmatprep.subr.bf16.mxu0 0
        %302 = vmatpush2.bf16.msra.mxu0 0
        %303 = vmatprep.subr.bf16.mxu0 0
        %304 = vmatpush2.bf16.msra.mxu0 0
        %305 = vmatprep.subr.bf16.mxu0 0
        %306 = vmatpush2.bf16.msra.mxu0 0
        %307 = vmatprep.subr.bf16.mxu0 0
        %308 = vmatpush2.bf16.msra.mxu0 0
        %309 = vmatprep.subr.bf16.mxu0 0
        %310 = vmatpush2.bf16.msra.mxu0 0
        %311 = vmatprep.subr.bf16.mxu0 0
        %312 = vmatpush2.bf16.msra.mxu0 0
        %313 = vmatprep.subr.bf16.mxu0 0
        %314 = vmatpush2.bf16.msra.mxu0 0
        %315 = vmatprep.subr.bf16.mxu0 0
        %316 = vmatpush2.bf16.msra.mxu0 0
        %317 = vmatprep.mubr.bf16.mxu0 0
        %318 = vmatmul.mubr.bf16.gmra.mxu0 %v258
        %v319 = vpop.f32.mrf.mxu0
        %v320 = vadd.f32 %v199, %v319
        %v321 = vpop.f32.mrf.mxu0
        %v322 = vpop.f32.mrf.mxu0
        %v323 = vadd.f32 %v199, %v322
        %v324 = vpop.f32.mrf.mxu0
        %325 = vmatprep.mubr.bf16.mxu0 0
        %326 = vmatmul.mubr.bf16.gmra.mxu0 %v261
        %v327 = vpop.f32.mrf.mxu0
        %v328 = vadd.f32 %v199, %v327
        %v329 = vpop.f32.mrf.mxu0
        %v330 = vpop.f32.mrf.mxu0
        %v331 = vadd.f32 %v199, %v330
        %v332 = vpop.f32.mrf.mxu0
        %333 = vmatprep.mubr.bf16.mxu0 0
        %334 = vmatmul.mubr.bf16.gmra.mxu0 %v264
        %v335 = vpop.f32.mrf.mxu0
        %v336 = vadd.f32 %v199, %v335
        %v337 = vpop.f32.mrf.mxu0
        %v338 = vpop.f32.mrf.mxu0
        %v339 = vadd.f32 %v199, %v338
        %v340 = vpop.f32.mrf.mxu0
        %341 = vmatprep.mubr.bf16.mxu0 0
        %342 = vmatmul.mubr.bf16.gmra.mxu0 %v267
        %v343 = vpop.f32.mrf.mxu0
        %v344 = vadd.f32 %v199, %v343
        %v345 = vpop.f32.mrf.mxu0
        %v346 = vpop.f32.mrf.mxu0
        %v347 = vadd.f32 %v199, %v346
        %v348 = vpop.f32.mrf.mxu0
        %349 = vmatprep.mubr.bf16.mxu0 0
        %350 = vmatmul.mubr.bf16.gmra.mxu0 %v270
        %v351 = vpop.f32.mrf.mxu0
        %v352 = vadd.f32 %v199, %v351
        %v353 = vpop.f32.mrf.mxu0
        %v354 = vpop.f32.mrf.mxu0
        %v355 = vadd.f32 %v199, %v354
        %v356 = vpop.f32.mrf.mxu0
        %357 = vmatprep.mubr.bf16.mxu0 0
        %358 = vmatmul.mubr.bf16.gmra.mxu0 %v273
        %v359 = vpop.f32.mrf.mxu0
        %v360 = vadd.f32 %v199, %v359
        %v361 = vpop.f32.mrf.mxu0
        %v362 = vpop.f32.mrf.mxu0
        %v363 = vadd.f32 %v199, %v362
        %v364 = vpop.f32.mrf.mxu0
        %365 = vmatprep.mubr.bf16.mxu0 0
        %366 = vmatmul.mubr.bf16.gmra.mxu0 %v276
        %v367 = vpop.f32.mrf.mxu0
        %v368 = vadd.f32 %v199, %v367
        %v369 = vpop.f32.mrf.mxu0
        %v370 = vpop.f32.mrf.mxu0
        %v371 = vadd.f32 %v199, %v370
        %v372 = vpop.f32.mrf.mxu0
        %373 = vmatprep.mubr.bf16.mxu0 0
        %374 = vmatmul.mubr.bf16.gmra.mxu0 %v279
        %v375 = vpop.f32.mrf.mxu0
        %v376 = vadd.f32 %v199, %v375
        %v377 = vpop.f32.mrf.mxu0
        %v378 = vpop.f32.mrf.mxu0
        %v379 = vadd.f32 %v199, %v378
        %v380 = vpop.f32.mrf.mxu0
        %381 = vdwg.mxu0
        %v382 = vadd.f32 %v320, 3.0
        %v383 = vadd.f32 %v323, 3.0
        %v384 = vadd.f32 %v328, 3.0
        %v385 = vadd.f32 %v331, 3.0
        %v386 = vadd.f32 %v336, 3.0
        %v387 = vadd.f32 %v339, 3.0
        %v388 = vadd.f32 %v344, 3.0
        %v389 = vadd.f32 %v347, 3.0
        %v390 = vadd.f32 %v352, 3.0
        %v391 = vadd.f32 %v355, 3.0
        %v392 = vadd.f32 %v360, 3.0
        %v393 = vadd.f32 %v363, 3.0
        %v394 = vadd.f32 %v368, 3.0
        %v395 = vadd.f32 %v371, 3.0
        %v396 = vadd.f32 %v376, 3.0
        %v397 = vadd.f32 %v379, 3.0
        %v398 = vmax.f32 %v382, 0.0
        %v399 = vmax.f32 %v383, 0.0
        %v400 = vmax.f32 %v384, 0.0
        %v401 = vmax.f32 %v385, 0.0
        %v402 = vmax.f32 %v386, 0.0
        %v403 = vmax.f32 %v387, 0.0
        %v404 = vmax.f32 %v388, 0.0
        %v405 = vmax.f32 %v389, 0.0
        %v406 = vmax.f32 %v390, 0.0
        %v407 = vmax.f32 %v391, 0.0
        %v408 = vmax.f32 %v392, 0.0
        %v409 = vmax.f32 %v393, 0.0
        %v410 = vmax.f32 %v394, 0.0
        %v411 = vmax.f32 %v395, 0.0
        %v412 = vmax.f32 %v396, 0.0
        %v413 = vmax.f32 %v397, 0.0
        %v414 = vmin.f32 %v398, 6.0
        %v415 = vmin.f32 %v399, 6.0
        %v416 = vmin.f32 %v400, 6.0
        %v417 = vmin.f32 %v401, 6.0
        %v418 = vmin.f32 %v402, 6.0
        %v419 = vmin.f32 %v403, 6.0
        %v420 = vmin.f32 %v404, 6.0
        %v421 = vmin.f32 %v405, 6.0
        %v422 = vmin.f32 %v406, 6.0
        %v423 = vmin.f32 %v407, 6.0
        %v424 = vmin.f32 %v408, 6.0
        %v425 = vmin.f32 %v409, 6.0
        %v426 = vmin.f32 %v410, 6.0
        %v427 = vmin.f32 %v411, 6.0
        %v428 = vmin.f32 %v412, 6.0
        %v429 = vmin.f32 %v413, 6.0
        %v430 = vmul.f32 %v320, %v414
        %v431 = vmul.f32 %v323, %v415
        %v432 = vmul.f32 %v328, %v416
        %v433 = vmul.f32 %v331, %v417
        %v434 = vmul.f32 %v336, %v418
        %v435 = vmul.f32 %v339, %v419
        %v436 = vmul.f32 %v344, %v420
        %v437 = vmul.f32 %v347, %v421
        %v438 = vmul.f32 %v352, %v422
        %v439 = vmul.f32 %v355, %v423
        %v440 = vmul.f32 %v360, %v424
        %v441 = vmul.f32 %v363, %v425
        %v442 = vmul.f32 %v368, %v426
        %v443 = vmul.f32 %v371, %v427
        %v444 = vmul.f32 %v376, %v428
        %v445 = vmul.f32 %v379, %v429
        %v446 = vmul.f32 %v430, 0.16666667
        %v447 = vmul.f32 %v431, 0.16666667
        %v448 = vmul.f32 %v432, 0.16666667
        %v449 = vmul.f32 %v433, 0.16666667
        %v450 = vmul.f32 %v434, 0.16666667
        %v451 = vmul.f32 %v435, 0.16666667
        %v452 = vmul.f32 %v436, 0.16666667
        %v453 = vmul.f32 %v437, 0.16666667
        %v454 = vmul.f32 %v438, 0.16666667
        %v455 = vmul.f32 %v439, 0.16666667
        %v456 = vmul.f32 %v440, 0.16666667
        %v457 = vmul.f32 %v441, 0.16666667
        %v458 = vmul.f32 %v442, 0.16666667
        %v459 = vmul.f32 %v443, 0.16666667
        %v460 = vmul.f32 %v444, 0.16666667
        %v461 = vmul.f32 %v445, 0.16666667
        %462 = vst [vmem:[%s164] sm:$0xff] %v446
        %463 = vst [vmem:[%s164 + $0x8] sm:$0xff] %v447
        %464 = vst [vmem:[%s164 + $0x10] sm:$0xff] %v448
        %465 = vst [vmem:[%s164 + $0x18] sm:$0xff] %v449
        %466 = vst [vmem:[%s164 + $0x20] sm:$0xff] %v450
        %467 = vst [vmem:[%s164 + $0x28] sm:$0xff] %v451
        %468 = vst [vmem:[%s164 + $0x30] sm:$0xff] %v452
        %469 = vst [vmem:[%s164 + $0x38] sm:$0xff] %v453
        %470 = vst [vmem:[%s164 + $0x40] sm:$0xff] %v454
        %471 = vst [vmem:[%s164 + $0x48] sm:$0xff] %v455
        %472 = vst [vmem:[%s164 + $0x50] sm:$0xff] %v456
        %473 = vst [vmem:[%s164 + $0x58] sm:$0xff] %v457
        %474 = vst [vmem:[%s164 + $0x60] sm:$0xff] %v458
        %475 = vst [vmem:[%s164 + $0x68] sm:$0xff] %v459
        %476 = vst [vmem:[%s164 + $0x70] sm:$0xff] %v460
        %477 = vst [vmem:[%s164 + $0x78] sm:$0xff] %v461
        %s478 = sand.u32 %s93, 1
        %s479 = scalar_lea.sflag [#allocation3], %s478
        %s480 = sand.u32 %s93, 1
        %s481 = smul.addr %s480, 128
        %s482 = scalar_lea.vmem [#allocation2], %s481
        // Predicated region
        $region33: #{tpu_custom_call.1} parent=31 // pred_check
          %p483 = pneg %p103
        $region34: #{tpu_custom_call.1} parent=31 // pred_check_branch
          %485 = sbr.rel (%p483) target = $region36
        $region35: #{tpu_custom_call.1} parent=31 // pred_region
          %s486 = smul.u32 16, %s17
          %s488 = ssub.s32 2048, 2048
          %489 = vsyncadd %s479, %s488
          %s490 = smul.addr %s486, 128
          %s491 = scalar_lea.hbm %s3, %s490
          %s492 = sshll.u32 %s482, 4
          %s493 = int_to_ptr.vmem [resolvable:$true] %s492
          %498 = dma.vmem_to_hbm [thread:$0]  %s493, 2048, %s491, %s479, 128, 128, 8
        $region36: #{tpu_custom_call.1} parent=31 // pred_fallthru
          _
      $region32: #{tpu_custom_call.1} parent=5 // pred_fallthru
        _
      %p499 = scmp.le.s32.totalorder 2, %s12
      // Predicated region
      $region37: #{tpu_custom_call.1} parent=5 // pred_check
        %p500 = pneg %p499
      $region38: #{tpu_custom_call.1} parent=5 // pred_check_branch
        %502 = sbr.rel (%p500) target = $region40
      $region39: #{tpu_custom_call.1} parent=5 // pred_region
        %s503 = ssub.s32 %s12, 2
        // Predicated region
        $region41: #{tpu_custom_call.1} parent=39 // pred_check
          %p504 = pneg %p109
        $region42: #{tpu_custom_call.1} parent=39 // pred_check_branch
          %506 = sbr.rel (%p504) target = $region44
        $region43: #{tpu_custom_call.1} parent=39 // pred_region
          %s507 = sand.u32 %s94, 1
          %s508 = scalar_lea.sflag [#allocation3], %s507
          %s509 = sand.u32 %s94, 1
          %s510 = smul.addr %s509, 128
          %s511 = scalar_lea.vmem [#allocation2], %s510
          %512 = dma.done %s508, 2048
        $region44: #{tpu_custom_call.1} parent=39 // pred_fallthru
          _
      $region40: #{tpu_custom_call.1} parent=5 // pred_fallthru
        _
    $region6: #{tpu_custom_call.1} parent=1 // loop_footer
      %s16 = sadd.s32 1, %s12
    $region7: #{tpu_custom_call.1} parent=1 // loop_footer_branch
      %11 = sbr.rel target = $region3
    $region8: #{tpu_custom_call.1} parent=1 // loop_exit
      _
    %513 = vsyncpa [#allocation3], 1
    %s514 = scalar_lea.sflag [#allocation3], 1
    %515 = vsyncpa %s514, 1

</llo_original>
